<compile_context>
chip_gen: v7x
topology: tpu7x:2x2x1
jax: 0.10.0
libtpu: 0.0.40
codegen_flags: <defaults>
</compile_context>

<pallas_src>
import functools

import jax
import jax.numpy as jnp
from jax import lax
from jax.experimental import pallas as pl
from jax.experimental.pallas import tpu as pltpu


def _lstm_recurrence_kernel(gx_ref, h0_ref, c0_ref, whh_ref,
                            hn_ref, cn_ref, *, t_block):
    """One grid step processes `t_block` timesteps of the LSTM recurrence.

    gx_ref : (T, 4, Bp, H)  precomputed x@W_ih^T + (b_ih+b_hh), split per gate
    h0_ref : (Bp, H)        initial hidden state (leading 1 squeezed)
    c0_ref : (Bp, H)        initial cell state
    whh_ref: (4, H, H)      per-gate recurrent weights, already transposed
    hn_ref : (Bp, H)        resident carry / final hidden state (output)
    cn_ref : (Bp, H)        resident carry / final cell state (output)
    """
    # Initialize the resident carries from the encoder hidden states.
    @pl.when(pl.program_id(0) == 0)
    def _():
        hn_ref[...] = h0_ref[...]
        cn_ref[...] = c0_ref[...]

    def step(tl, carry):
        h, c = carry
        gx_t = gx_ref[tl]                       # (4, Bp, H)
        # Four aligned per-gate dots -- no cross-lane slicing of a fused 4H.
        i_g = jax.nn.sigmoid(
            gx_t[0] + jnp.dot(h, whh_ref[0], preferred_element_type=jnp.float32))
        f_g = jax.nn.sigmoid(
            gx_t[1] + jnp.dot(h, whh_ref[1], preferred_element_type=jnp.float32))
        g_g = jnp.tanh(
            gx_t[2] + jnp.dot(h, whh_ref[2], preferred_element_type=jnp.float32))
        o_g = jax.nn.sigmoid(
            gx_t[3] + jnp.dot(h, whh_ref[3], preferred_element_type=jnp.float32))
        c_new = f_g * c + i_g * g_g
        h_new = o_g * jnp.tanh(c_new)
        return h_new, c_new

    h, c = lax.fori_loop(0, t_block, step, (hn_ref[...], cn_ref[...]),
                         unroll=True)
    hn_ref[...] = h
    cn_ref[...] = c


def lstm_decoder_forward(x_input, encoder_hidden_states, params):
    """x_input: (seq_len, batch, input_size) f32 (time-major, batch_first=False)
       encoder_hidden_states: (h0, c0), each (1, batch, hidden) f32
       returns (prediction, (h_n, c_n)).

       prediction = Linear(final hidden state); this matches the PyTorch
       module (lstm_out.squeeze(0) -> Linear) for its intended seq_len == 1
       decoder step.  For seq_len > 1 only the last-step prediction is
       returned (the recurrence itself is exact for any seq_len).
    """
    h0, c0 = encoder_hidden_states
    S, B, In = x_input.shape
    H = h0.shape[-1]

    # --- batch padding to a full f32 sublane group (8) -----------------------
    Bp = ((B + 7) // 8) * 8
    if Bp != B:
        pad = [(0, 0), (0, Bp - B), (0, 0)]
        x_input = jnp.pad(x_input, pad)
        h0 = jnp.pad(h0, pad)
        c0 = jnp.pad(c0, pad)

    # --- hoist input projection + both biases out of the recurrence (XLA) ----
    b = params["b_ih"] + params["b_hh"]                       # (4H,)
    gx = (x_input.reshape(S * Bp, In) @ params["w_ih"].T + b)  # (S*Bp, 4H)
    gx = gx.reshape(S, Bp, 4, H)
    gx = jnp.transpose(gx, (0, 2, 1, 3)).astype(jnp.float32)   # (S, 4, Bp, H)

    # Per-gate recurrent weight slabs: whh[k] = W_hh[kH:(k+1)H, :]^T  (H, H)
    whh = jnp.transpose(params["w_hh"].reshape(4, H, H), (0, 2, 1))
    whh = whh.astype(jnp.float32)

    # --- time blocking: several steps per grid iteration ---------------------
    T = next(t for t in (8, 4, 2, 1) if S % t == 0)
    grid = (S // T,)

    kernel = functools.partial(_lstm_recurrence_kernel, t_block=T)

    h_n, c_n = pl.pallas_call(
        kernel,
        out_shape=(jax.ShapeDtypeStruct((1, Bp, H), jnp.float32),   # h_n
                   jax.ShapeDtypeStruct((1, Bp, H), jnp.float32)),  # c_n
        grid_spec=pltpu.PrefetchScalarGridSpec(
            num_scalar_prefetch=0,
            grid=grid,
            in_specs=[
                pl.BlockSpec((T, 4, Bp, H), lambda n: (n, 0, 0, 0)),   # gx
                pl.BlockSpec((None, Bp, H), lambda n: (0, 0, 0)),      # h0
                pl.BlockSpec((None, Bp, H), lambda n: (0, 0, 0)),      # c0
                pl.BlockSpec((4, H, H), lambda n: (0, 0, 0)),          # W_hh slabs
            ],
            out_specs=[
                pl.BlockSpec((None, Bp, H), lambda n: (0, 0, 0)),      # h_n carry
                pl.BlockSpec((None, Bp, H), lambda n: (0, 0, 0)),      # c_n carry
            ],
        ),
        compiler_params=pltpu.CompilerParams(
            dimension_semantics=("arbitrary",)),   # sequential recurrence
    )(gx, h0, c0, whh)

    # --- Linear head applied once, outside the recurrence --------------------
    h_last = h_n[0, :B]                                       # (B, H)
    prediction = h_last @ params["w_lin"].T + params["b_lin"]  # (B, O)

    return prediction, (h_n[:, :B], c_n[:, :B])


def _reference_forward(x_input, encoder_hidden_states, params):
    """Pure-JAX reference of PyTorch nn.LSTM(num_layers=1) + nn.Linear,
    prediction taken from the final hidden state (seq_len==1 decoder step)."""
    h, c = encoder_hidden_states
    h, c = h[0], c[0]
    H = h.shape[-1]
    for t in range(x_input.shape[0]):
        gates = (x_input[t] @ params["w_ih"].T + params["b_ih"]
                 + h @ params["w_hh"].T + params["b_hh"])
        i = jax.nn.sigmoid(gates[:, 0:H])
        f = jax.nn.sigmoid(gates[:, H:2 * H])
        g = jnp.tanh(gates[:, 2 * H:3 * H])
        o = jax.nn.sigmoid(gates[:, 3 * H:4 * H])
        c = f * c + i * g
        h = o * jnp.tanh(c)
    pred = h @ params["w_lin"].T + params["b_lin"]
    return pred, (h[None], c[None])


def init_params(key, input_size, hidden_size, output_size):
    """PyTorch-style uniform(-1/sqrt(H), 1/sqrt(H)) init, deterministic."""
    ks = jax.random.split(key, 6)
    bound = 1.0 / jnp.sqrt(hidden_size)
    u = lambda k, shape: jax.random.uniform(k, shape, jnp.float32, -bound, bound)
    return {
        "w_ih": u(ks[0], (4 * hidden_size, input_size)),
        "w_hh": u(ks[1], (4 * hidden_size, hidden_size)),
        "b_ih": u(ks[2], (4 * hidden_size,)),
        "b_hh": u(ks[3], (4 * hidden_size,)),
        "w_lin": u(ks[4], (output_size, hidden_size)),
        "b_lin": u(ks[5], (output_size,)),
    }


if __name__ == "__main__":
    INPUT_SIZE, HIDDEN_SIZE, OUTPUT_SIZE = 32, 64, 1
    BATCH = 2

    key = jax.random.PRNGKey(0)
    k_x, k_h, k_c, k_p = jax.random.split(key, 4)
    params = init_params(k_p, INPUT_SIZE, HIDDEN_SIZE, OUTPUT_SIZE)

    # --- primary decoder case: single time step (seq_len == 1) ---------------
    SEQ_LEN = 1
    x_input = jax.random.normal(k_x, (SEQ_LEN, BATCH, INPUT_SIZE), jnp.float32)
    h0 = jax.random.normal(k_h, (1, BATCH, HIDDEN_SIZE), jnp.float32)
    c0 = jax.random.normal(k_c, (1, BATCH, HIDDEN_SIZE), jnp.float32)

    prediction, (h_n, c_n) = lstm_decoder_forward(x_input, (h0, c0), params)
    jax.block_until_ready((prediction, h_n, c_n))

    ref_pred, (ref_h, ref_c) = _reference_forward(x_input, (h0, c0), params)
    assert prediction.shape == (BATCH, OUTPUT_SIZE)
    assert h_n.shape == (1, BATCH, HIDDEN_SIZE)
    assert c_n.shape == (1, BATCH, HIDDEN_SIZE)
    assert jnp.allclose(prediction, ref_pred, atol=1e-5, rtol=1e-5)
    assert jnp.allclose(h_n, ref_h, atol=1e-5, rtol=1e-5)
    assert jnp.allclose(c_n, ref_c, atol=1e-5, rtol=1e-5)

    # --- multi-step sanity check (exercises time-blocked recurrence path) ----
    SEQ_LEN2 = 4
    x2 = jax.random.normal(k_x, (SEQ_LEN2, BATCH, INPUT_SIZE), jnp.float32)
    pred2, (h_n2, c_n2) = lstm_decoder_forward(x2, (h0, c0), params)
    jax.block_until_ready((pred2, h_n2, c_n2))
    ref_pred2, (ref_h2, ref_c2) = _reference_forward(x2, (h0, c0), params)
    assert jnp.allclose(pred2, ref_pred2, atol=1e-5, rtol=1e-5)
    assert jnp.allclose(h_n2, ref_h2, atol=1e-5, rtol=1e-5)
    assert jnp.allclose(c_n2, ref_c2, atol=1e-5, rtol=1e-5)

    print("KERNEL_OK")
</pallas_src>

<mosaic_0001>
module attributes {stable_mosaic.version = 11 : i64} {
  func.func @_lstm_recurrence_kernel(%arg0: i32, %arg1: memref<1x4x8x64xf32, #tpu.memory_space<vmem>>, %arg2: memref<1x8x64xf32, #tpu.memory_space<vmem>>, %arg3: memref<1x8x64xf32, #tpu.memory_space<vmem>>, %arg4: memref<4x64x64xf32, #tpu.memory_space<vmem>>, %arg5: memref<1x8x64xf32, #tpu.memory_space<vmem>>, %arg6: memref<1x8x64xf32, #tpu.memory_space<vmem>>) attributes {dimension_semantics = [#tpu.dimension_semantics<arbitrary>], iteration_bounds = array<i64: 1>, scalar_prefetch = 0 : i64, scratch_operands = 0 : i64, tpu.core_type = #tpu.core_type<tc>, window_params = [{transform_indices = @transform_0, window_bounds = array<i64: 1, 4, 8, 64>}, {pipeline_mode = #tpu.pipeline_mode<synchronous>, transform_indices = @transform_1, window_bounds = array<i64: 1, 8, 64>}, {pipeline_mode = #tpu.pipeline_mode<synchronous>, transform_indices = @transform_2, window_bounds = array<i64: 1, 8, 64>}, {pipeline_mode = #tpu.pipeline_mode<synchronous>, transform_indices = @transform_3, window_bounds = array<i64: 4, 64, 64>}, {pipeline_mode = #tpu.pipeline_mode<synchronous>, transform_indices = @transform_4, window_bounds = array<i64: 1, 8, 64>}, {pipeline_mode = #tpu.pipeline_mode<synchronous>, transform_indices = @transform_5, window_bounds = array<i64: 1, 8, 64>}]} {
    %c0_i32 = arith.constant 0 : i32
    %0 = arith.cmpi eq, %arg0, %c0_i32 : i32
    %1 = arith.extui %0 : i1 to i32
    %c0_i32_0 = arith.constant 0 : i32
    %2 = arith.cmpi ne, %1, %c0_i32_0 : i32
    scf.if %2 {
      %c0_31 = arith.constant 0 : index
      %c0_32 = arith.constant 0 : index
      %c0_33 = arith.constant 0 : index
      %61 = vector.load %arg2[%c0_31, %c0_32, %c0_33] : memref<1x8x64xf32, #tpu.memory_space<vmem>>, vector<1x8x64xf32>
      %62 = vector.shape_cast %61 : vector<1x8x64xf32> to vector<8x64xf32>
      %c0_34 = arith.constant 0 : index
      %c0_35 = arith.constant 0 : index
      %c0_36 = arith.constant 0 : index
      %63 = vector.load %arg5[%c0_34, %c0_35, %c0_36] : memref<1x8x64xf32, #tpu.memory_space<vmem>>, vector<1x8x64xf32>
      %64 = vector.shape_cast %63 : vector<1x8x64xf32> to vector<8x64xf32>
      %65 = vector.shape_cast %62 : vector<8x64xf32> to vector<1x8x64xf32>
      tpu.vector_store %arg5[%c0_34, %c0_35, %c0_36], %65 {strides = array<i32>} : memref<1x8x64xf32, #tpu.memory_space<vmem>>, vector<1x8x64xf32>,
      %c0_37 = arith.constant 0 : index
      %c0_38 = arith.constant 0 : index
      %c0_39 = arith.constant 0 : index
      %66 = vector.load %arg3[%c0_37, %c0_38, %c0_39] : memref<1x8x64xf32, #tpu.memory_space<vmem>>, vector<1x8x64xf32>
      %67 = vector.shape_cast %66 : vector<1x8x64xf32> to vector<8x64xf32>
      %c0_40 = arith.constant 0 : index
      %c0_41 = arith.constant 0 : index
      %c0_42 = arith.constant 0 : index
      %68 = vector.load %arg6[%c0_40, %c0_41, %c0_42] : memref<1x8x64xf32, #tpu.memory_space<vmem>>, vector<1x8x64xf32>
      %69 = vector.shape_cast %68 : vector<1x8x64xf32> to vector<8x64xf32>
      %70 = vector.shape_cast %67 : vector<8x64xf32> to vector<1x8x64xf32>
      tpu.vector_store %arg6[%c0_40, %c0_41, %c0_42], %70 {strides = array<i32>} : memref<1x8x64xf32, #tpu.memory_space<vmem>>, vector<1x8x64xf32>,
    } else {
    }
    %c0 = arith.constant 0 : index
    %c0_1 = arith.constant 0 : index
    %c0_2 = arith.constant 0 : index
    %3 = vector.load %arg5[%c0, %c0_1, %c0_2] : memref<1x8x64xf32, #tpu.memory_space<vmem>>, vector<1x8x64xf32>
    %4 = vector.shape_cast %3 : vector<1x8x64xf32> to vector<8x64xf32>
    %c0_3 = arith.constant 0 : index
    %c0_4 = arith.constant 0 : index
    %c0_5 = arith.constant 0 : index
    %5 = vector.load %arg6[%c0_3, %c0_4, %c0_5] : memref<1x8x64xf32, #tpu.memory_space<vmem>>, vector<1x8x64xf32>
    %6 = vector.shape_cast %5 : vector<1x8x64xf32> to vector<8x64xf32>
    %c0_i32_6 = arith.constant 0 : i32
    %7 = arith.index_cast %c0_i32_6 : i32 to index
    %c0_7 = arith.constant 0 : index
    %c0_8 = arith.constant 0 : index
    %c0_9 = arith.constant 0 : index
    %8 = vector.load %arg1[%7, %c0_7, %c0_8, %c0_9] : memref<1x4x8x64xf32, #tpu.memory_space<vmem>>, vector<1x4x8x64xf32>
    %9 = vector.shape_cast %8 : vector<1x4x8x64xf32> to vector<4x8x64xf32>
    %10 = vector.extract_strided_slice %9 {offsets = [0, 0, 0], sizes = [1, 8, 64], strides = [1, 1, 1]} : vector<4x8x64xf32> to vector<1x8x64xf32>
    %11 = vector.shape_cast %10 : vector<1x8x64xf32> to vector<8x64xf32>
    %c0_10 = arith.constant 0 : index
    %c0_11 = arith.constant 0 : index
    %c0_12 = arith.constant 0 : index
    %12 = vector.load %arg4[%c0_10, %c0_11, %c0_12] : memref<4x64x64xf32, #tpu.memory_space<vmem>>, vector<1x64x64xf32>
    %13 = vector.shape_cast %12 : vector<1x64x64xf32> to vector<64x64xf32>
    %cst = arith.constant dense<0.000000e+00> : vector<8x64xf32>
    %14 = tpu.matmul %4, %13, %cst {dimension_numbers = #tpu.dot_dimension_numbers<[1], [0], [0], [1], [0, 0, 1, 1], [], []>} : vector<8x64xf32>, vector<64x64xf32>, vector<8x64xf32> -> vector<8x64xf32>
    %15 = arith.addf %11, %14 : vector<8x64xf32>
    %16 = arith.negf %15 : vector<8x64xf32>
    %17 = math.exp %16 : vector<8x64xf32>
    %cst_13 = arith.constant 1.000000e+00 : f32
    %18 = vector.broadcast %cst_13 : f32 to vector<8x64xf32>
    %19 = arith.addf %18, %17 : vector<8x64xf32>
    %20 = arith.divf %18, %19 : vector<8x64xf32>
    %21 = vector.extract_strided_slice %9 {offsets = [1, 0, 0], sizes = [1, 8, 64], strides = [1, 1, 1]} : vector<4x8x64xf32> to vector<1x8x64xf32>
    %22 = vector.shape_cast %21 : vector<1x8x64xf32> to vector<8x64xf32>
    %c1 = arith.constant 1 : index
    %c0_14 = arith.constant 0 : index
    %c0_15 = arith.constant 0 : index
    %23 = vector.load %arg4[%c1, %c0_14, %c0_15] : memref<4x64x64xf32, #tpu.memory_space<vmem>>, vector<1x64x64xf32>
    %24 = vector.shape_cast %23 : vector<1x64x64xf32> to vector<64x64xf32>
    %cst_16 = arith.constant dense<0.000000e+00> : vector<8x64xf32>
    %25 = tpu.matmul %4, %24, %cst_16 {dimension_numbers = #tpu.dot_dimension_numbers<[1], [0], [0], [1], [0, 0, 1, 1], [], []>} : vector<8x64xf32>, vector<64x64xf32>, vector<8x64xf32> -> vector<8x64xf32>
    %26 = arith.addf %22, %25 : vector<8x64xf32>
    %27 = arith.negf %26 : vector<8x64xf32>
    %28 = math.exp %27 : vector<8x64xf32>
    %cst_17 = arith.constant 1.000000e+00 : f32
    %29 = vector.broadcast %cst_17 : f32 to vector<8x64xf32>
    %30 = arith.addf %29, %28 : vector<8x64xf32>
    %31 = arith.divf %29, %30 : vector<8x64xf32>
    %32 = vector.extract_strided_slice %9 {offsets = [2, 0, 0], sizes = [1, 8, 64], strides = [1, 1, 1]} : vector<4x8x64xf32> to vector<1x8x64xf32>
    %33 = vector.shape_cast %32 : vector<1x8x64xf32> to vector<8x64xf32>
    %c2 = arith.constant 2 : index
    %c0_18 = arith.constant 0 : index
    %c0_19 = arith.constant 0 : index
    %34 = vector.load %arg4[%c2, %c0_18, %c0_19] : memref<4x64x64xf32, #tpu.memory_space<vmem>>, vector<1x64x64xf32>
    %35 = vector.shape_cast %34 : vector<1x64x64xf32> to vector<64x64xf32>
    %cst_20 = arith.constant dense<0.000000e+00> : vector<8x64xf32>
    %36 = tpu.matmul %4, %35, %cst_20 {dimension_numbers = #tpu.dot_dimension_numbers<[1], [0], [0], [1], [0, 0, 1, 1], [], []>} : vector<8x64xf32>, vector<64x64xf32>, vector<8x64xf32> -> vector<8x64xf32>
    %37 = arith.addf %33, %36 : vector<8x64xf32>
    %38 = math.tanh %37 : vector<8x64xf32>
    %39 = vector.extract_strided_slice %9 {offsets = [3, 0, 0], sizes = [1, 8, 64], strides = [1, 1, 1]} : vector<4x8x64xf32> to vector<1x8x64xf32>
    %40 = vector.shape_cast %39 : vector<1x8x64xf32> to vector<8x64xf32>
    %c3 = arith.constant 3 : index
    %c0_21 = arith.constant 0 : index
    %c0_22 = arith.constant 0 : index
    %41 = vector.load %arg4[%c3, %c0_21, %c0_22] : memref<4x64x64xf32, #tpu.memory_space<vmem>>, vector<1x64x64xf32>
    %42 = vector.shape_cast %41 : vector<1x64x64xf32> to vector<64x64xf32>
    %cst_23 = arith.constant dense<0.000000e+00> : vector<8x64xf32>
    %43 = tpu.matmul %4, %42, %cst_23 {dimension_numbers = #tpu.dot_dimension_numbers<[1], [0], [0], [1], [0, 0, 1, 1], [], []>} : vector<8x64xf32>, vector<64x64xf32>, vector<8x64xf32> -> vector<8x64xf32>
    %44 = arith.addf %40, %43 : vector<8x64xf32>
    %45 = arith.negf %44 : vector<8x64xf32>
    %46 = math.exp %45 : vector<8x64xf32>
    %cst_24 = arith.constant 1.000000e+00 : f32
    %47 = vector.broadcast %cst_24 : f32 to vector<8x64xf32>
    %48 = arith.addf %47, %46 : vector<8x64xf32>
    %49 = arith.divf %47, %48 : vector<8x64xf32>
    %50 = arith.mulf %31, %6 : vector<8x64xf32>
    %51 = arith.mulf %20, %38 : vector<8x64xf32>
    %52 = arith.addf %50, %51 : vector<8x64xf32>
    %53 = math.tanh %52 : vector<8x64xf32>
    %54 = arith.mulf %49, %53 : vector<8x64xf32>
    %c1_i32 = arith.constant 1 : i32
    %c0_25 = arith.constant 0 : index
    %c0_26 = arith.constant 0 : index
    %c0_27 = arith.constant 0 : index
    %55 = vector.load %arg5[%c0_25, %c0_26, %c0_27] : memref<1x8x64xf32, #tpu.memory_space<vmem>>, vector<1x8x64xf32>
    %56 = vector.shape_cast %55 : vector<1x8x64xf32> to vector<8x64xf32>
    %57 = vector.shape_cast %54 : vector<8x64xf32> to vector<1x8x64xf32>
    tpu.vector_store %arg5[%c0_25, %c0_26, %c0_27], %57 {strides = array<i32>} : memref<1x8x64xf32, #tpu.memory_space<vmem>>, vector<1x8x64xf32>,
    %c0_28 = arith.constant 0 : index
    %c0_29 = arith.constant 0 : index
    %c0_30 = arith.constant 0 : index
    %58 = vector.load %arg6[%c0_28, %c0_29, %c0_30] : memref<1x8x64xf32, #tpu.memory_space<vmem>>, vector<1x8x64xf32>
    %59 = vector.shape_cast %58 : vector<1x8x64xf32> to vector<8x64xf32>
    %60 = vector.shape_cast %52 : vector<8x64xf32> to vector<1x8x64xf32>
    tpu.vector_store %arg6[%c0_28, %c0_29, %c0_30], %60 {strides = array<i32>} : memref<1x8x64xf32, #tpu.memory_space<vmem>>, vector<1x8x64xf32>,
    return
  }
  func.func @transform_0(%arg0: i32) -> (i32, i32, i32, i32) {
    %c0_i32 = arith.constant 0 : i32
    %c0_i32_0 = arith.constant 0 : i32
    %c0_i32_1 = arith.constant 0 : i32
    %c0_i32_2 = arith.constant 0 : i32
    return %arg0, %c0_i32, %c0_i32_0, %c0_i32_1 : i32, i32, i32, i32
  }
  func.func @transform_1(%arg0: i32) -> (i32, i32, i32) {
    %c0_i32 = arith.constant 0 : i32
    %c0_i32_0 = arith.constant 0 : i32
    %c0_i32_1 = arith.constant 0 : i32
    %c0_i32_2 = arith.constant 0 : i32
    return %c0_i32, %c0_i32_0, %c0_i32_1 : i32, i32, i32
  }
  func.func @transform_2(%arg0: i32) -> (i32, i32, i32) {
    %c0_i32 = arith.constant 0 : i32
    %c0_i32_0 = arith.constant 0 : i32
    %c0_i32_1 = arith.constant 0 : i32
    %c0_i32_2 = arith.constant 0 : i32
    return %c0_i32, %c0_i32_0, %c0_i32_1 : i32, i32, i32
  }
  func.func @transform_3(%arg0: i32) -> (i32, i32, i32) {
    %c0_i32 = arith.constant 0 : i32
    %c0_i32_0 = arith.constant 0 : i32
    %c0_i32_1 = arith.constant 0 : i32
    %c0_i32_2 = arith.constant 0 : i32
    return %c0_i32, %c0_i32_0, %c0_i32_1 : i32, i32, i32
  }
  func.func @transform_4(%arg0: i32) -> (i32, i32, i32) {
    %c0_i32 = arith.constant 0 : i32
    %c0_i32_0 = arith.constant 0 : i32
    %c0_i32_1 = arith.constant 0 : i32
    %c0_i32_2 = arith.constant 0 : i32
    return %c0_i32, %c0_i32_0, %c0_i32_1 : i32, i32, i32
  }
  func.func @transform_5(%arg0: i32) -> (i32, i32, i32) {
    %c0_i32 = arith.constant 0 : i32
    %c0_i32_0 = arith.constant 0 : i32
    %c0_i32_1 = arith.constant 0 : i32
    %c0_i32_2 = arith.constant 0 : i32
    return %c0_i32, %c0_i32_0, %c0_i32_1 : i32, i32, i32
  }
}

</mosaic_0001>

<llo_original>
// kernel: tpu_custom_call.1
$region0: #{tpu_custom_call.1}
  #allocation0 [shape = 'u32[]', space=smem, size = 0x4, offset = 0x4, fixed_abs, tag = 'smem constant byte address 0x4 - core index']
  #allocation1 [shape = 'u32[144,128]{1,0:T(1,128)}', space=vmem, size = 0x12000, scoped, tag = 'internal scratch']
  %s0 = inlined_call_operand.hbm [shape: f32[1,4,8,64], index: 0, kind: input, shape index: {}]
  %s1 = inlined_call_operand.hbm [shape: f32[1,8,64], index: 1, kind: input, shape index: {}]
  %s2 = inlined_call_operand.hbm [shape: f32[1,8,64], index: 2, kind: input, shape index: {}]
  %s3 = inlined_call_operand.hbm [shape: f32[4,64,64], index: 3, kind: input, shape index: {}]
  %s4 = inlined_call_operand.hbm [shape: f32[1,8,64], index: 4, kind: output, shape index: {0}]
  %s5 = inlined_call_operand.hbm [shape: f32[1,8,64], index: 5, kind: output, shape index: {1}]
  %6 = xla_tuple %s4, %s5
  %s7 = sld [smem:[#allocation0]]
  $region54: #{tpu_custom_call.1} parent=0
    _
  %s9 = ssub.s32 1, %s7
  %s10 = scalar_select 0, %s9, %s7
  $region1: #{tpu_custom_call.1} parent=0
    #allocation2 [shape = 'u8[16384]{0}', space=vmem, size = 0x4000, scoped, tag = 'input window, operand 0, single buffered']
    #allocation3 [shape = 's32[1]{0}', space=sflag, size = 0x4, scoped, tag = 'scoped memory for tpu_custom_call.1']
    #allocation4 [shape = 's32[1]{0}', space=sflag, size = 0x4, scoped, tag = 'scoped memory for tpu_custom_call.1']
    #allocation5 [shape = 'u8[4096]{0}', space=vmem, size = 0x1000, scoped, tag = 'input window, operand 1, single buffered']
    #allocation6 [shape = 's32[1]{0}', space=sflag, size = 0x4, scoped, tag = 'scoped memory for tpu_custom_call.1']
    #allocation7 [shape = 'u8[4096]{0}', space=vmem, size = 0x1000, scoped, tag = 'input window, operand 2, single buffered']
    #allocation8 [shape = 'u8[131072]{0}', space=vmem, size = 0x20000, scoped, tag = 'input window, operand 3, single buffered']
    #allocation9 [shape = 's32[1]{0}', space=sflag, size = 0x4, scoped, tag = 'scoped memory for tpu_custom_call.1']
    #allocation10 [shape = 'u8[4096]{0}', space=vmem, size = 0x1000, scoped, tag = 'output window, operand 0, single buffered']
    #allocation11 [shape = 'u8[4096]{0}', space=vmem, size = 0x1000, scoped, tag = 'output window, operand 1, single buffered']
    #allocation12 [shape = 's32[1]{0}', space=sflag, size = 0x4, scoped, tag = 'scoped memory for tpu_custom_call.1']
    %11 = vsyncpa [#allocation3], 0
    %12 = vsyncpa [#allocation6], 0
    %13 = vsyncpa [#allocation9], 0
    %14 = vsyncpa [#allocation4], 0
    %15 = vsyncpa [#allocation12], 0
    // Predicated region
    $region2: #{tpu_custom_call.1} parent=1 // pred_check
      _
    $region3: #{tpu_custom_call.1} parent=1 // pred_check_branch
      %17 = sbr.rel (0) target = $region5
    $region4: #{tpu_custom_call.1} parent=1 // pred_region
      %s19 = ssub.s32 512, 512
      %20 = vsyncadd [#allocation3], %s19
      %s21 = sshll.u32 [#allocation2], 4
      %s22 = int_to_ptr.vmem [resolvable:$true] %s21
      %27 = dma.hbm_to_vmem [thread:$0]  %s0, 512, %s22, [#allocation3], 128, 128, 8
    $region5: #{tpu_custom_call.1} parent=1 // pred_fallthru
      _
    // Predicated region
    $region6: #{tpu_custom_call.1} parent=1 // pred_check
      _
    $region7: #{tpu_custom_call.1} parent=1 // pred_check_branch
      %29 = sbr.rel (0) target = $region9
    $region8: #{tpu_custom_call.1} parent=1 // pred_region
      %s31 = ssub.s32 128, 128
      %32 = vsyncadd [#allocation6], %s31
      %s34 = sshll.u32 [#allocation5], 4
      %s35 = int_to_ptr.vmem [resolvable:$true] %s34
      %37 = dma.hbm_to_vmem [thread:$0]  %s1, 128, %s35, [#allocation6]
    $region9: #{tpu_custom_call.1} parent=1 // pred_fallthru
      _
    // Predicated region
    $region10: #{tpu_custom_call.1} parent=1 // pred_check
      _
    $region11: #{tpu_custom_call.1} parent=1 // pred_check_branch
      %39 = sbr.rel (0) target = $region13
    $region12: #{tpu_custom_call.1} parent=1 // pred_region
      %s41 = ssub.s32 128, 128
      %42 = vsyncadd [#allocation6], %s41
      %s44 = sshll.u32 [#allocation7], 4
      %s45 = int_to_ptr.vmem [resolvable:$true] %s44
      %47 = dma.hbm_to_vmem [thread:$0]  %s2, 128, %s45, [#allocation6]
    $region13: #{tpu_custom_call.1} parent=1 // pred_fallthru
      _
    // Predicated region
    $region14: #{tpu_custom_call.1} parent=1 // pred_check
      _
    $region15: #{tpu_custom_call.1} parent=1 // pred_check_branch
      %49 = sbr.rel (0) target = $region17
    $region16: #{tpu_custom_call.1} parent=1 // pred_region
      %s51 = ssub.s32 4096, 4096
      %52 = vsyncadd [#allocation9], %s51
      %s53 = sshll.u32 [#allocation8], 4
      %s54 = int_to_ptr.vmem [resolvable:$true] %s53
      %59 = dma.hbm_to_vmem [thread:$0]  %s3, 4096, %s54, [#allocation9], 128, 128, 8
    $region17: #{tpu_custom_call.1} parent=1 // pred_fallthru
      _
    // Predicated region
    $region18: #{tpu_custom_call.1} parent=1 // pred_check
      _
    $region19: #{tpu_custom_call.1} parent=1 // pred_check_branch
      %61 = sbr.rel (0) target = $region21
    $region20: #{tpu_custom_call.1} parent=1 // pred_region
      %62 = dma.done [#allocation3], 512
    $region21: #{tpu_custom_call.1} parent=1 // pred_fallthru
      _
    // Predicated region
    $region22: #{tpu_custom_call.1} parent=1 // pred_check
      _
    $region23: #{tpu_custom_call.1} parent=1 // pred_check_branch
      %64 = sbr.rel (0) target = $region25
    $region24: #{tpu_custom_call.1} parent=1 // pred_region
      %65 = dma.done [#allocation6], 128
    $region25: #{tpu_custom_call.1} parent=1 // pred_fallthru
      _
    // Predicated region
    $region26: #{tpu_custom_call.1} parent=1 // pred_check
      _
    $region27: #{tpu_custom_call.1} parent=1 // pred_check_branch
      %67 = sbr.rel (0) target = $region29
    $region28: #{tpu_custom_call.1} parent=1 // pred_region
      %68 = dma.done [#allocation6], 128
    $region29: #{tpu_custom_call.1} parent=1 // pred_fallthru
      _
    // Predicated region
    $region30: #{tpu_custom_call.1} parent=1 // pred_check
      _
    $region31: #{tpu_custom_call.1} parent=1 // pred_check_branch
      %70 = sbr.rel (0) target = $region33
    $region32: #{tpu_custom_call.1} parent=1 // pred_region
      %71 = dma.done [#allocation9], 4096
    $region33: #{tpu_custom_call.1} parent=1 // pred_fallthru
      _
    %p72 = scmp.eq.s32.totalorder 0, 0
    // Predicated region
    $region34: #{tpu_custom_call.1} parent=1 // pred_check
      %p73 = pneg %p72
    $region35: #{tpu_custom_call.1} parent=1 // pred_check_branch
      %75 = sbr.rel (%p73) target = $region37
    $region36: #{tpu_custom_call.1} parent=1 // pred_region
      %v76 = vld [vmem:[#allocation5] sm:$0xff]
      %vm77 = vcmask 523264
      %78 = vst.msk [vmem:[#allocation10] sm:$0xff] %vm77, %v76
      %v79 = vld [vmem:[#allocation7] sm:$0xff]
      %80 = vst.msk [vmem:[#allocation11] sm:$0xff] %vm77, %v79
    $region37: #{tpu_custom_call.1} parent=1 // pred_fallthru
      _
    %v81 = vld [vmem:[#allocation10] sm:$0xff]
    %v82 = vld [vmem:[#allocation11] sm:$0xff]
    %v83 = vld [vmem:[#allocation2] sm:$0xff]
    %v84 = vld [vmem:[#allocation2 + $0x8] sm:$0xff]
    %v85 = vld [vmem:[#allocation2 + $0x10] sm:$0xff]
    %v86 = vld [vmem:[#allocation2 + $0x18] sm:$0xff]
    %v87 = vld [vmem:[#allocation8] sm:$0xff]
    %v88 = vld [vmem:[#allocation8 + $0x8] sm:$0xff]
    %v89 = vld [vmem:[#allocation8 + $0x10] sm:$0xff]
    %v90 = vld [vmem:[#allocation8 + $0x18] sm:$0xff]
    %v91 = vld [vmem:[#allocation8 + $0x20] sm:$0xff]
    %v92 = vld [vmem:[#allocation8 + $0x28] sm:$0xff]
    %v93 = vld [vmem:[#allocation8 + $0x30] sm:$0xff]
    %v94 = vld [vmem:[#allocation8 + $0x38] sm:$0xff]
    %vm95 = vcmask 523264
    %v97 = vsel %vm95, %v81, 0
    %99 = vmatprep.subr.mxu0 0.0
    %100 = vmatpush1.msra.mxu0 %v87
    %101 = vmatprep.subr.mxu0 0.0
    %102 = vmatpush1.msra.mxu0 %v88
    %103 = vmatprep.subr.mxu0 0.0
    %104 = vmatpush1.msra.mxu0 %v89
    %105 = vmatprep.subr.mxu0 0.0
    %106 = vmatpush1.msra.mxu0 %v90
    %107 = vmatprep.subr.mxu0 0.0
    %108 = vmatpush1.msra.mxu0 %v91
    %109 = vmatprep.subr.mxu0 0.0
    %110 = vmatpush1.msra.mxu0 %v92
    %111 = vmatprep.subr.mxu0 0.0
    %112 = vmatpush1.msra.mxu0 %v93
    %113 = vmatprep.subr.mxu0 0.0
    %114 = vmatpush1.msra.mxu0 %v94
    %115 = vmatprep.subr.mxu0 0.0
    %116 = vmatpush1.msra.mxu0 0.0
    %117 = vmatprep.subr.mxu0 0.0
    %118 = vmatpush1.msra.mxu0 0.0
    %119 = vmatprep.subr.mxu0 0.0
    %120 = vmatpush1.msra.mxu0 0.0
    %121 = vmatprep.subr.mxu0 0.0
    %122 = vmatpush1.msra.mxu0 0.0
    %123 = vmatprep.subr.mxu0 0.0
    %124 = vmatpush1.msra.mxu0 0.0
    %125 = vmatprep.subr.mxu0 0.0
    %126 = vmatpush1.msra.mxu0 0.0
    %127 = vmatprep.subr.mxu0 0.0
    %128 = vmatpush1.msra.mxu0 0.0
    %129 = vmatprep.subr.mxu0 0.0
    %130 = vmatpush1.msra.mxu0 0.0
    %131 = vmatprep.subr.mxu0 0.0
    %132 = vmatpush1.msra.mxu0 0.0
    %133 = vmatprep.subr.mxu0 0.0
    %134 = vmatpush1.msra.mxu0 0.0
    %135 = vmatprep.subr.mxu0 0.0
    %136 = vmatpush1.msra.mxu0 0.0
    %137 = vmatprep.subr.mxu0 0.0
    %138 = vmatpush1.msra.mxu0 0.0
    %139 = vmatprep.subr.mxu0 0.0
    %140 = vmatpush1.msra.mxu0 0.0
    %141 = vmatprep.subr.mxu0 0.0
    %142 = vmatpush1.msra.mxu0 0.0
    %143 = vmatprep.subr.mxu0 0.0
    %144 = vmatpush1.msra.mxu0 0.0
    %145 = vmatprep.subr.mxu0 0.0
    %146 = vmatpush1.msra.mxu0 0.0
    %147 = vmatprep.subr.mxu0 0.0
    %148 = vmatpush1.msra.mxu0 0.0
    %149 = vmatprep.subr.mxu0 0.0
    %150 = vmatpush1.msra.mxu0 0.0
    %151 = vmatprep.subr.mxu0 0.0
    %152 = vmatpush1.msra.mxu0 0.0
    %153 = vmatprep.subr.mxu0 0.0
    %154 = vmatpush1.msra.mxu0 0.0
    %155 = vmatprep.subr.mxu0 0.0
    %156 = vmatpush1.msra.mxu0 0.0
    %157 = vmatprep.subr.mxu0 0.0
    %158 = vmatpush1.msra.mxu0 0.0
    %159 = vmatprep.subr.mxu0 0.0
    %160 = vmatpush1.msra.mxu0 0.0
    %161 = vmatprep.subr.mxu0 0.0
    %162 = vmatpush1.msra.mxu0 0.0
    %163 = vmatprep.mubr.f32.mxu0 0.0
    %164 = vmatmul.mubr.f32.gmra.mrb[0].mxu0 %v97
    %v165 = vpop.f32.mrb[0].mxu0
    %v166 = vadd.f32 0.0, %v165
    %v167 = vpop.f32.mrb[0].mxu0
    %168 = vdwg.mxu0
    %v169 = vadd.f32 %v83, %v166
    %v170 = vxor.u32 %v169, 2147483648
    %v171 = vmul.f32 %v170, 1.442695
    %v172 = vpow.pop %v171
    %v173 = vadd.f32 %v172, 1.0
    %v174 = vrcp.pop %v173
    %v175 = vmul.f32 1.0, %v174
    %s176 = scalar_lea.vmem [#allocation8], 64
    %v177 = vld [vmem:[%s176] sm:$0xff]
    %v178 = vld [vmem:[%s176 + $0x8] sm:$0xff]
    %v179 = vld [vmem:[%s176 + $0x10] sm:$0xff]
    %v180 = vld [vmem:[%s176 + $0x18] sm:$0xff]
    %v181 = vld [vmem:[%s176 + $0x20] sm:$0xff]
    %v182 = vld [vmem:[%s176 + $0x28] sm:$0xff]
    %v183 = vld [vmem:[%s176 + $0x30] sm:$0xff]
    %v184 = vld [vmem:[%s176 + $0x38] sm:$0xff]
    %185 = vmatprep.subr.mxu0 0.0
    %186 = vmatpush1.msra.mxu0 %v177
    %187 = vmatprep.subr.mxu0 0.0
    %188 = vmatpush1.msra.mxu0 %v178
    %189 = vmatprep.subr.mxu0 0.0
    %190 = vmatpush1.msra.mxu0 %v179
    %191 = vmatprep.subr.mxu0 0.0
    %192 = vmatpush1.msra.mxu0 %v180
    %193 = vmatprep.subr.mxu0 0.0
    %194 = vmatpush1.msra.mxu0 %v181
    %195 = vmatprep.subr.mxu0 0.0
    %196 = vmatpush1.msra.mxu0 %v182
    %197 = vmatprep.subr.mxu0 0.0
    %198 = vmatpush1.msra.mxu0 %v183
    %199 = vmatprep.subr.mxu0 0.0
    %200 = vmatpush1.msra.mxu0 %v184
    %201 = vmatprep.subr.mxu0 0.0
    %202 = vmatpush1.msra.mxu0 0.0
    %203 = vmatprep.subr.mxu0 0.0
    %204 = vmatpush1.msra.mxu0 0.0
    %205 = vmatprep.subr.mxu0 0.0
    %206 = vmatpush1.msra.mxu0 0.0
    %207 = vmatprep.subr.mxu0 0.0
    %208 = vmatpush1.msra.mxu0 0.0
    %209 = vmatprep.subr.mxu0 0.0
    %210 = vmatpush1.msra.mxu0 0.0
    %211 = vmatprep.subr.mxu0 0.0
    %212 = vmatpush1.msra.mxu0 0.0
    %213 = vmatprep.subr.mxu0 0.0
    %214 = vmatpush1.msra.mxu0 0.0
    %215 = vmatprep.subr.mxu0 0.0
    %216 = vmatpush1.msra.mxu0 0.0
    %217 = vmatprep.subr.mxu0 0.0
    %218 = vmatpush1.msra.mxu0 0.0
    %219 = vmatprep.subr.mxu0 0.0
    %220 = vmatpush1.msra.mxu0 0.0
    %221 = vmatprep.subr.mxu0 0.0
    %222 = vmatpush1.msra.mxu0 0.0
    %223 = vmatprep.subr.mxu0 0.0
    %224 = vmatpush1.msra.mxu0 0.0
    %225 = vmatprep.subr.mxu0 0.0
    %226 = vmatpush1.msra.mxu0 0.0
    %227 = vmatprep.subr.mxu0 0.0
    %228 = vmatpush1.msra.mxu0 0.0
    %229 = vmatprep.subr.mxu0 0.0
    %230 = vmatpush1.msra.mxu0 0.0
    %231 = vmatprep.subr.mxu0 0.0
    %232 = vmatpush1.msra.mxu0 0.0
    %233 = vmatprep.subr.mxu0 0.0
    %234 = vmatpush1.msra.mxu0 0.0
    %235 = vmatprep.subr.mxu0 0.0
    %236 = vmatpush1.msra.mxu0 0.0
    %237 = vmatprep.subr.mxu0 0.0
    %238 = vmatpush1.msra.mxu0 0.0
    %239 = vmatprep.subr.mxu0 0.0
    %240 = vmatpush1.msra.mxu0 0.0
    %241 = vmatprep.subr.mxu0 0.0
    %242 = vmatpush1.msra.mxu0 0.0
    %243 = vmatprep.subr.mxu0 0.0
    %244 = vmatpush1.msra.mxu0 0.0
    %245 = vmatprep.subr.mxu0 0.0
    %246 = vmatpush1.msra.mxu0 0.0
    %247 = vmatprep.subr.mxu0 0.0
    %248 = vmatpush1.msra.mxu0 0.0
    %249 = vmatprep.mubr.f32.mxu0 0.0
    %250 = vmatmul.mubr.f32.gmra.mrb[0].mxu0 %v97
    %v251 = vpop.f32.mrb[0].mxu0
    %v252 = vadd.f32 0.0, %v251
    %v253 = vpop.f32.mrb[0].mxu0
    %254 = vdwg.mxu0
    %v255 = vadd.f32 %v84, %v252
    %v256 = vxor.u32 %v255, 2147483648
    %v257 = vmul.f32 %v256, 1.442695
    %v258 = vpow.pop %v257
    %v259 = vadd.f32 %v258, 1.0
    %v260 = vrcp.pop %v259
    %v261 = vmul.f32 1.0, %v260
    %s262 = scalar_lea.vmem [#allocation8], 128
    %v263 = vld [vmem:[%s262] sm:$0xff]
    %v264 = vld [vmem:[%s262 + $0x8] sm:$0xff]
    %v265 = vld [vmem:[%s262 + $0x10] sm:$0xff]
    %v266 = vld [vmem:[%s262 + $0x18] sm:$0xff]
    %v267 = vld [vmem:[%s262 + $0x20] sm:$0xff]
    %v268 = vld [vmem:[%s262 + $0x28] sm:$0xff]
    %v269 = vld [vmem:[%s262 + $0x30] sm:$0xff]
    %v270 = vld [vmem:[%s262 + $0x38] sm:$0xff]
    %271 = vmatprep.subr.mxu0 0.0
    %272 = vmatpush1.msra.mxu0 %v263
    %273 = vmatprep.subr.mxu0 0.0
    %274 = vmatpush1.msra.mxu0 %v264
    %275 = vmatprep.subr.mxu0 0.0
    %276 = vmatpush1.msra.mxu0 %v265
    %277 = vmatprep.subr.mxu0 0.0
    %278 = vmatpush1.msra.mxu0 %v266
    %279 = vmatprep.subr.mxu0 0.0
    %280 = vmatpush1.msra.mxu0 %v267
    %281 = vmatprep.subr.mxu0 0.0
    %282 = vmatpush1.msra.mxu0 %v268
    %283 = vmatprep.subr.mxu0 0.0
    %284 = vmatpush1.msra.mxu0 %v269
    %285 = vmatprep.subr.mxu0 0.0
    %286 = vmatpush1.msra.mxu0 %v270
    %287 = vmatprep.subr.mxu0 0.0
    %288 = vmatpush1.msra.mxu0 0.0
    %289 = vmatprep.subr.mxu0 0.0
    %290 = vmatpush1.msra.mxu0 0.0
    %291 = vmatprep.subr.mxu0 0.0
    %292 = vmatpush1.msra.mxu0 0.0
    %293 = vmatprep.subr.mxu0 0.0
    %294 = vmatpush1.msra.mxu0 0.0
    %295 = vmatprep.subr.mxu0 0.0
    %296 = vmatpush1.msra.mxu0 0.0
    %297 = vmatprep.subr.mxu0 0.0
    %298 = vmatpush1.msra.mxu0 0.0
    %299 = vmatprep.subr.mxu0 0.0
    %300 = vmatpush1.msra.mxu0 0.0
    %301 = vmatprep.subr.mxu0 0.0
    %302 = vmatpush1.msra.mxu0 0.0
    %303 = vmatprep.subr.mxu0 0.0
    %304 = vmatpush1.msra.mxu0 0.0
    %305 = vmatprep.subr.mxu0 0.0
    %306 = vmatpush1.msra.mxu0 0.0
    %307 = vmatprep.subr.mxu0 0.0
    %308 = vmatpush1.msra.mxu0 0.0
    %309 = vmatprep.subr.mxu0 0.0
    %310 = vmatpush1.msra.mxu0 0.0
    %311 = vmatprep.subr.mxu0 0.0
    %312 = vmatpush1.msra.mxu0 0.0
    %313 = vmatprep.subr.mxu0 0.0
    %314 = vmatpush1.msra.mxu0 0.0
    %315 = vmatprep.subr.mxu0 0.0
    %316 = vmatpush1.msra.mxu0 0.0
    %317 = vmatprep.subr.mxu0 0.0
    %318 = vmatpush1.msra.mxu0 0.0
    %319 = vmatprep.subr.mxu0 0.0
    %320 = vmatpush1.msra.mxu0 0.0
    %321 = vmatprep.subr.mxu0 0.0
    %322 = vmatpush1.msra.mxu0 0.0
    %323 = vmatprep.subr.mxu0 0.0
    %324 = vmatpush1.msra.mxu0 0.0
    %325 = vmatprep.subr.mxu0 0.0
    %326 = vmatpush1.msra.mxu0 0.0
    %327 = vmatprep.subr.mxu0 0.0
    %328 = vmatpush1.msra.mxu0 0.0
    %329 = vmatprep.subr.mxu0 0.0
    %330 = vmatpush1.msra.mxu0 0.0
    %331 = vmatprep.subr.mxu0 0.0
    %332 = vmatpush1.msra.mxu0 0.0
    %333 = vmatprep.subr.mxu0 0.0
    %334 = vmatpush1.msra.mxu0 0.0
    %335 = vmatprep.mubr.f32.mxu0 0.0
    %336 = vmatmul.mubr.f32.gmra.mrb[0].mxu0 %v97
    %v337 = vpop.f32.mrb[0].mxu0
    %v338 = vadd.f32 0.0, %v337
    %v339 = vpop.f32.mrb[0].mxu0
    %340 = vdwg.mxu0
    %v341 = vadd.f32 %v85, %v338
    %v342 = vtanh.pop %v341
    %s343 = scalar_lea.vmem [#allocation8], 192
    %v344 = vld [vmem:[%s343] sm:$0xff]
    %v345 = vld [vmem:[%s343 + $0x8] sm:$0xff]
    %v346 = vld [vmem:[%s343 + $0x10] sm:$0xff]
    %v347 = vld [vmem:[%s343 + $0x18] sm:$0xff]
    %v348 = vld [vmem:[%s343 + $0x20] sm:$0xff]
    %v349 = vld [vmem:[%s343 + $0x28] sm:$0xff]
    %v350 = vld [vmem:[%s343 + $0x30] sm:$0xff]
    %v351 = vld [vmem:[%s343 + $0x38] sm:$0xff]
    %352 = vmatprep.subr.mxu0 0.0
    %353 = vmatpush1.msra.mxu0 %v344
    %354 = vmatprep.subr.mxu0 0.0
    %355 = vmatpush1.msra.mxu0 %v345
    %356 = vmatprep.subr.mxu0 0.0
    %357 = vmatpush1.msra.mxu0 %v346
    %358 = vmatprep.subr.mxu0 0.0
    %359 = vmatpush1.msra.mxu0 %v347
    %360 = vmatprep.subr.mxu0 0.0
    %361 = vmatpush1.msra.mxu0 %v348
    %362 = vmatprep.subr.mxu0 0.0
    %363 = vmatpush1.msra.mxu0 %v349
    %364 = vmatprep.subr.mxu0 0.0
    %365 = vmatpush1.msra.mxu0 %v350
    %366 = vmatprep.subr.mxu0 0.0
    %367 = vmatpush1.msra.mxu0 %v351
    %368 = vmatprep.subr.mxu0 0.0
    %369 = vmatpush1.msra.mxu0 0.0
    %370 = vmatprep.subr.mxu0 0.0
    %371 = vmatpush1.msra.mxu0 0.0
    %372 = vmatprep.subr.mxu0 0.0
    %373 = vmatpush1.msra.mxu0 0.0
    %374 = vmatprep.subr.mxu0 0.0
    %375 = vmatpush1.msra.mxu0 0.0
    %376 = vmatprep.subr.mxu0 0.0
    %377 = vmatpush1.msra.mxu0 0.0
    %378 = vmatprep.subr.mxu0 0.0
    %379 = vmatpush1.msra.mxu0 0.0
    %380 = vmatprep.subr.mxu0 0.0
    %381 = vmatpush1.msra.mxu0 0.0
    %382 = vmatprep.subr.mxu0 0.0
    %383 = vmatpush1.msra.mxu0 0.0
    %384 = vmatprep.subr.mxu0 0.0
    %385 = vmatpush1.msra.mxu0 0.0
    %386 = vmatprep.subr.mxu0 0.0
    %387 = vmatpush1.msra.mxu0 0.0
    %388 = vmatprep.subr.mxu0 0.0
    %389 = vmatpush1.msra.mxu0 0.0
    %390 = vmatprep.subr.mxu0 0.0
    %391 = vmatpush1.msra.mxu0 0.0
    %392 = vmatprep.subr.mxu0 0.0
    %393 = vmatpush1.msra.mxu0 0.0
    %394 = vmatprep.subr.mxu0 0.0
    %395 = vmatpush1.msra.mxu0 0.0
    %396 = vmatprep.subr.mxu0 0.0
    %397 = vmatpush1.msra.mxu0 0.0
    %398 = vmatprep.subr.mxu0 0.0
    %399 = vmatpush1.msra.mxu0 0.0
    %400 = vmatprep.subr.mxu0 0.0
    %401 = vmatpush1.msra.mxu0 0.0
    %402 = vmatprep.subr.mxu0 0.0
    %403 = vmatpush1.msra.mxu0 0.0
    %404 = vmatprep.subr.mxu0 0.0
    %405 = vmatpush1.msra.mxu0 0.0
    %406 = vmatprep.subr.mxu0 0.0
    %407 = vmatpush1.msra.mxu0 0.0
    %408 = vmatprep.subr.mxu0 0.0
    %409 = vmatpush1.msra.mxu0 0.0
    %410 = vmatprep.subr.mxu0 0.0
    %411 = vmatpush1.msra.mxu0 0.0
    %412 = vmatprep.subr.mxu0 0.0
    %413 = vmatpush1.msra.mxu0 0.0
    %414 = vmatprep.subr.mxu0 0.0
    %415 = vmatpush1.msra.mxu0 0.0
    %416 = vmatprep.mubr.f32.mxu0 0.0
    %417 = vmatmul.mubr.f32.gmra.mrb[0].mxu0 %v97
    %v418 = vpop.f32.mrb[0].mxu0
    %v419 = vadd.f32 0.0, %v418
    %v420 = vpop.f32.mrb[0].mxu0
    %421 = vdwg.mxu0
    %v422 = vadd.f32 %v86, %v419
    %v423 = vxor.u32 %v422, 2147483648
    %v424 = vmul.f32 %v423, 1.442695
    %v425 = vpow.pop %v424
    %v426 = vadd.f32 %v425, 1.0
    %v427 = vrcp.pop %v426
    %v428 = vmul.f32 1.0, %v427
    %v429 = vmul.f32 %v261, %v82
    %v430 = vmul.f32 %v175, %v342
    %v431 = vadd.f32 %v429, %v430
    %v432 = vtanh.pop %v431
    %v433 = vmul.f32 %v428, %v432
    %434 = vst.msk [vmem:[#allocation10] sm:$0xff] %vm95, %v433
    %435 = vst.msk [vmem:[#allocation11] sm:$0xff] %vm95, %v431
    // Predicated region
    $region38: #{tpu_custom_call.1} parent=1 // pred_check
      _
    $region39: #{tpu_custom_call.1} parent=1 // pred_check_branch
      %437 = sbr.rel (0) target = $region41
    $region40: #{tpu_custom_call.1} parent=1 // pred_region
      %s439 = ssub.s32 128, 128
      %440 = vsyncadd [#allocation4], %s439
      %s442 = sshll.u32 [#allocation10], 4
      %s443 = int_to_ptr.vmem [resolvable:$true] %s442
      %445 = dma.vmem_to_hbm [thread:$0]  %s443, 128, %s4, [#allocation4]
    $region41: #{tpu_custom_call.1} parent=1 // pred_fallthru
      _
    // Predicated region
    $region42: #{tpu_custom_call.1} parent=1 // pred_check
      _
    $region43: #{tpu_custom_call.1} parent=1 // pred_check_branch
      %447 = sbr.rel (0) target = $region45
    $region44: #{tpu_custom_call.1} parent=1 // pred_region
      %s449 = ssub.s32 128, 128
      %450 = vsyncadd [#allocation12], %s449
      %s452 = sshll.u32 [#allocation11], 4
      %s453 = int_to_ptr.vmem [resolvable:$true] %s452
      %455 = dma.vmem_to_hbm [thread:$0]  %s453, 128, %s5, [#allocation12]
    $region45: #{tpu_custom_call.1} parent=1 // pred_fallthru
      _
    // Predicated region
    $region46: #{tpu_custom_call.1} parent=1 // pred_check
      _
    $region47: #{tpu_custom_call.1} parent=1 // pred_check_branch
      %457 = sbr.rel (0) target = $region49
    $region48: #{tpu_custom_call.1} parent=1 // pred_region
      %458 = dma.done [#allocation4], 128
    $region49: #{tpu_custom_call.1} parent=1 // pred_fallthru
      _
    // Predicated region
    $region50: #{tpu_custom_call.1} parent=1 // pred_check
      _
    $region51: #{tpu_custom_call.1} parent=1 // pred_check_branch
      %460 = sbr.rel (0) target = $region53
    $region52: #{tpu_custom_call.1} parent=1 // pred_region
      %461 = dma.done [#allocation12], 128
    $region53: #{tpu_custom_call.1} parent=1 // pred_fallthru
      _
    %462 = vsyncpa [#allocation3], 1
    %463 = vsyncpa [#allocation6], 1
    %464 = vsyncpa [#allocation9], 1
    %465 = vsyncpa [#allocation4], 1
    %466 = vsyncpa [#allocation12], 1

</llo_original>
